<compile_context>
chip_gen: v7x
topology: tpu7x:2x2x1
jax: 0.10.0
libtpu: 0.0.40
codegen_flags: <defaults>
</compile_context>

<pallas_src>
import math

import jax
import jax.numpy as jnp
from jax.experimental import pallas as pl
from jax.experimental.pallas import tpu as pltpu


def _sim_kernel(x_ref, p_ref, o_ref):
    """One row tile: bare MXU matmul (x tile) @ (pre-centered pattern matrix)."""
    o_ref[...] = jnp.dot(
        x_ref[...], p_ref[...], preferred_element_type=jnp.float32
    ).astype(o_ref.dtype)


def _round_up(v: int, mult: int) -> int:
    return ((v + mult - 1) // mult) * mult


def _vmem_capacity_bytes() -> int:
    try:
        return int(pltpu.get_tpu_info().vmem_capacity_bytes)
    except Exception:
        return 64 << 20  # conservative (v7x per-TC VMEM)


def learnable_pattern_unnorm_similarity(
    x: jax.Array,
    patterns: jax.Array,
    *,
    tm: int = 32768,          # target original rows per grid step (sweepable)
    lane_target: int = 128,   # f*n lane target; 64 for f32-on-v5e, 256 ok on v6e/v7x
    out_dtype=jnp.float32,    # bf16 here halves output HBM traffic if tolerated
) -> jax.Array:
    """
    Args:
        x:        (B, *A, width)
        patterns: (n, width)  (already cat([k, l], axis=1))
    Returns:
        (B, *A, n) similarity scores (centered dot products) in `out_dtype`.
    """
    width = x.shape[-1]
    n = patterns.shape[0]
    orig_shape = x.shape[:-1]
    m = math.prod(orig_shape) if orig_shape else 1
    x_flat = x.reshape(m, width)

    # ---- Center patterns once in f32 so sum(p_c) == 0 and the x-mean term
    # ---- cancels exactly in the dot product.
    p32 = patterns.astype(jnp.float32)
    p_c = p32 - jnp.mean(p32, axis=-1, keepdims=True)
    p_ct = p_c.T  # (width, n)

    if x.dtype == jnp.bfloat16:
        # Re-center the bf16-rounded patterns (twice) so their column sums
        # stay ~0 and the x-mean cancellation survives the bf16 cast.
        p_lo = p_ct.astype(jnp.bfloat16)
        for _ in range(2):
            resid = jnp.sum(p_lo.astype(jnp.float32), axis=0, keepdims=True) / width
            p_lo = (p_lo.astype(jnp.float32) - resid).astype(jnp.bfloat16)
        p_ct = p_lo
        x_k_src = x_flat  # keep bf16 feed to the MXU
    else:
        x_k_src = x_flat.astype(jnp.float32)
        p_ct = p_ct.astype(jnp.float32)

    # ---- Lane densification: fold f rows per kernel row (f*n lanes out).
    f = 1
    if n < lane_target and lane_target % n == 0:
        f = lane_target // n

    if f > 1:
        m_pad = _round_up(m, f)
        if m_pad != m:
            # Pad with zero rows instead of dropping the fold (keeps 128-lane
            # dense stores); padded output rows are sliced off below.
            x_k_src = jnp.pad(x_k_src, ((0, m_pad - m), (0, 0)))
        x_k = x_k_src.reshape(m_pad // f, f * width)
        # Block-diagonal pattern matrix (exact: multiply by 0/1 in f32).
        p_k = jnp.kron(
            jnp.eye(f, dtype=jnp.float32), p_ct.astype(jnp.float32)
        ).astype(p_ct.dtype)
    else:
        m_pad = m
        x_k = x_k_src
        p_k = p_ct

    m_k, k_k = x_k.shape
    n_k = p_k.shape[1]

    x_itemsize = jnp.dtype(x_k.dtype).itemsize
    out_itemsize = jnp.dtype(out_dtype).itemsize
    p_bytes = int(p_k.size) * jnp.dtype(p_k.dtype).itemsize

    # ---- Row-tile sizing.
    # Sublane multiple matches the packed tile for the input dtype.
    sub = max(8, 32 // x_itemsize)

    # Desired tile from tm (original rows) -> folded rows, sublane-rounded.
    tm_k = max(sub, _round_up(max(tm // f, 1), sub))

    # Keep >= 4 grid steps when the problem is large enough (v7x 2-TC
    # sharding of the "parallel" axis + DMA/compute pipelining).
    tm_k = min(tm_k, max(sub, _round_up(pl.cdiv(m_k, 4), sub)))

    # VMEM budget: 2x double-buffered (x tile + out tile) + 2x resident
    # pattern block, capped conservatively so it also fits v7x's 64 MiB.
    vmem_cap = _vmem_capacity_bytes()
    budget = min((vmem_cap * 3) // 4, 48 << 20)
    per_row = 2 * (k_k * x_itemsize + n_k * out_itemsize)
    max_rows_vmem = max(sub, ((budget - 2 * p_bytes) // max(per_row, 1)) // sub * sub)
    tm_k = min(tm_k, max_rows_vmem)

    if tm_k >= m_k:
        tm_k = m_k  # single full-extent block is always legal

    grid = (pl.cdiv(m_k, tm_k),)

    vmem_usage = tm_k * per_row + 2 * p_bytes
    vmem_limit = int(min(vmem_cap, max(32 << 20, vmem_usage + (4 << 20))))

    cost = pl.CostEstimate(
        flops=2 * m_k * k_k * n_k,
        transcendentals=0,
        bytes_accessed=m_k * k_k * x_itemsize + p_bytes + m_k * n_k * out_itemsize,
    )

    out = pl.pallas_call(
        _sim_kernel,
        out_shape=jax.ShapeDtypeStruct((m_k, n_k), out_dtype),
        grid_spec=pltpu.PrefetchScalarGridSpec(
            num_scalar_prefetch=0,
            grid=grid,
            in_specs=[
                pl.BlockSpec((tm_k, k_k), lambda i: (i, 0)),
                pl.BlockSpec((k_k, n_k), lambda i: (0, 0)),  # resident, constant
            ],
            out_specs=pl.BlockSpec((tm_k, n_k), lambda i: (i, 0)),
        ),
        compiler_params=pltpu.CompilerParams(
            dimension_semantics=("parallel",),
            vmem_limit_bytes=vmem_limit,
        ),
        cost_estimate=cost,
    )(x_k, p_k)

    # (m_pad//f, f*n) reshapes row-major to (m_pad, n); drop padded rows.
    out_flat = out.reshape(m_pad, n)
    if m_pad != m:
        out_flat = out_flat[:m]
    return out_flat.reshape(orig_shape + (n,))


def make_params(n: int, width: int, key: jax.Array):
    """Deterministic parameter init mirroring the PyTorch __init__."""
    k = jax.random.uniform(key, (n, width - 1), dtype=jnp.float32)  # torch.rand
    l = jnp.ones((n, 1), dtype=jnp.float32)                         # fixed ones
    return jnp.concatenate([k, l], axis=1)                          # (n, width)


def _reference(x: jax.Array, patterns: jax.Array) -> jax.Array:
    """Literal translation of the PyTorch forward (centers both x and p)."""
    p_c = patterns - jnp.mean(patterns, axis=-1, keepdims=True)
    x_c = x - jnp.mean(x, axis=-1, keepdims=True)
    return jnp.einsum("...w,nw->...n", x_c.astype(jnp.float32), p_c)


if __name__ == "__main__":
    key = jax.random.PRNGKey(0)
    k_param, k_x, k_x2 = jax.random.split(key, 3)

    n, width = 16, 32
    patterns = make_params(n, width, k_param)

    # Case 1: m divisible by the fold factor (dense path, multi-step grid).
    x = jax.random.normal(k_x, (2, 16, 8, width), dtype=jnp.float32)
    out = jax.block_until_ready(learnable_pattern_unnorm_similarity(x, patterns))
    ref = _reference(x, patterns)
    assert out.shape == (2, 16, 8, n), out.shape
    assert jnp.allclose(out, ref, atol=1e-4, rtol=1e-4), float(
        jnp.max(jnp.abs(out - ref)))

    # Case 2: ragged m (exercises the zero-row padding path).
    x2 = jax.random.normal(k_x2, (3, 5, width), dtype=jnp.float32)
    out2 = jax.block_until_ready(learnable_pattern_unnorm_similarity(x2, patterns))
    ref2 = _reference(x2, patterns)
    assert out2.shape == (3, 5, n), out2.shape
    assert jnp.allclose(out2, ref2, atol=1e-4, rtol=1e-4), float(
        jnp.max(jnp.abs(out2 - ref2)))

    print("KERNEL_OK")
</pallas_src>

<mosaic_0001>
module attributes {stable_mosaic.version = 11 : i64} {
  func.func @_sim_kernel(%arg0: i32, %arg1: memref<8x256xf32, #tpu.memory_space<vmem>>, %arg2: memref<256x128xf32, #tpu.memory_space<vmem>>, %arg3: memref<8x128xf32, #tpu.memory_space<vmem>>) attributes {dimension_semantics = [#tpu.dimension_semantics<parallel>], iteration_bounds = array<i64: 4>, scalar_prefetch = 0 : i64, scratch_operands = 0 : i64, tpu.core_type = #tpu.core_type<tc>, window_params = [{transform_indices = @transform_0, window_bounds = array<i64: 8, 256>}, {pipeline_mode = #tpu.pipeline_mode<synchronous>, transform_indices = @transform_1, window_bounds = array<i64: 256, 128>}, {transform_indices = @transform_2, window_bounds = array<i64: 8, 128>}]} {
    %c0 = arith.constant 0 : index
    %c0_0 = arith.constant 0 : index
    %0 = vector.load %arg1[%c0, %c0_0] : memref<8x256xf32, #tpu.memory_space<vmem>>, vector<8x256xf32>
    %c0_1 = arith.constant 0 : index
    %c0_2 = arith.constant 0 : index
    %1 = vector.load %arg2[%c0_1, %c0_2] : memref<256x128xf32, #tpu.memory_space<vmem>>, vector<256x128xf32>
    %cst = arith.constant dense<0.000000e+00> : vector<8x128xf32>
    %2 = tpu.matmul %0, %1, %cst {dimension_numbers = #tpu.dot_dimension_numbers<[1], [0], [0], [1], [0, 0, 1, 1], [], []>} : vector<8x256xf32>, vector<256x128xf32>, vector<8x128xf32> -> vector<8x128xf32>
    %c0_3 = arith.constant 0 : index
    %c0_4 = arith.constant 0 : index
    %3 = vector.load %arg3[%c0_3, %c0_4] : memref<8x128xf32, #tpu.memory_space<vmem>>, vector<8x128xf32>
    tpu.vector_store %arg3[%c0_3, %c0_4], %2 {strides = array<i32>} : memref<8x128xf32, #tpu.memory_space<vmem>>, vector<8x128xf32>,
    return
  }
  func.func @transform_0(%arg0: i32) -> (i32, i32) {
    %c0_i32 = arith.constant 0 : i32
    %c0_i32_0 = arith.constant 0 : i32
    return %arg0, %c0_i32 : i32, i32
  }
  func.func @transform_1(%arg0: i32) -> (i32, i32) {
    %c0_i32 = arith.constant 0 : i32
    %c0_i32_0 = arith.constant 0 : i32
    %c0_i32_1 = arith.constant 0 : i32
    return %c0_i32, %c0_i32_0 : i32, i32
  }
  func.func @transform_2(%arg0: i32) -> (i32, i32) {
    %c0_i32 = arith.constant 0 : i32
    %c0_i32_0 = arith.constant 0 : i32
    return %arg0, %c0_i32 : i32, i32
  }
}

</mosaic_0001>

<llo_original>
// kernel: tpu_custom_call.1
$region0: #{tpu_custom_call.1}
  #allocation0 [shape = 'u32[]', space=smem, size = 0x4, offset = 0x4, fixed_abs, tag = 'smem constant byte address 0x4 - core index']
  #allocation1 [shape = 'u32[144,128]{1,0:T(1,128)}', space=vmem, size = 0x12000, scoped, tag = 'internal scratch']
  %s0 = inlined_call_operand.hbm [shape: f32[32,256], index: 0, kind: input, shape index: {}]
  %s1 = inlined_call_operand.hbm [shape: f32[256,128], index: 1, kind: input, shape index: {}]
  %s2 = inlined_call_operand.hbm [shape: f32[32,128], index: 2, kind: output, shape index: {}]
  %s3 = sld [smem:[#allocation0]]
  $region49: #{tpu_custom_call.1} parent=0
    _
  %s5 = ssub.s32 1, %s3
  %s6 = scalar_select 0, %s5, %s3
  $region1: #{tpu_custom_call.1} parent=0
    #allocation2 [shape = 'u8[16384]{0}', space=vmem, size = 0x4000, scoped, tag = 'input window, operand 0']
    #allocation3 [shape = 's32[2]{0}', space=sflag, size = 0x8, scoped, tag = 'scoped memory for tpu_custom_call.1']
    #allocation4 [shape = 's32[2]{0}', space=sflag, size = 0x8, scoped, tag = 'scoped memory for tpu_custom_call.1']
    #allocation5 [shape = 'u8[131072]{0}', space=vmem, size = 0x20000, scoped, tag = 'input window, operand 1, single buffered']
    #allocation6 [shape = 's32[1]{0}', space=sflag, size = 0x4, scoped, tag = 'scoped memory for tpu_custom_call.1']
    #allocation7 [shape = 'u8[8192]{0}', space=vmem, size = 0x2000, scoped, tag = 'output window, operand 0']
    %7 = vsyncpa [#allocation3], 0
    %s8 = scalar_lea.sflag [#allocation3], 1
    %9 = vsyncpa %s8, 0
    %10 = vsyncpa [#allocation6], 0
    %11 = vsyncpa [#allocation4], 0
    %s12 = scalar_lea.sflag [#allocation4], 1
    %13 = vsyncpa %s12, 0
    loop: start=0, step=1, limit=6
    $region2: #{tpu_custom_call.1} parent=1 // loop_pre_header
      _
    $region3: #{tpu_custom_call.1} parent=1 // loop_header
      %s15 = sphi 0, %s19
      %p16 = scmp.ge.s32.totalorder %s15, 6
      %s25 = sphi 0, %s27
      %s28 = sphi 0, %s25
      %s29 = sphi 0, %s28
      %s45 = sphi 0, %s29
      %s49 = sphi 0, %s49
      %s51 = sphi 0, %s49
      %s52 = sphi 0, %s51
      %s66 = sphi 0, %s52
      %s72 = sphi 0, %s74
      %s75 = sphi 0, %s72
      %s76 = sphi 0, %s75
      %s92 = sphi 0, %s76
    $region4: #{tpu_custom_call.1} parent=1 // loop_header_branch
      %18 = sbr.rel (%p16) target = $region8
    $region5: #{tpu_custom_call.1} parent=1 // loop_body
      %s20 = ssub.s32 %s15, 1
      %s21 = ssub.s32 %s15, 2
      %s22 = sadd.s32 %s15, 1
      %s23 = ssub.s32 %s15, %s22
      %p24 = scmp.eq.s32.totalorder %s23, 0
      %s26 = sadd.s32 %s25, 1
      %s27 = scalar_select %p24, %s25, %s26
      %p30 = pneg %p24
      %p31 = scmp.eq.s32.totalorder %s15, 3
      %p32 = por %p30, %p31
      %p33 = scmp.ne.s32.totalorder %s25, %s28
      %p34 = scmp.eq.s32.totalorder %s15, 0
      %p35 = por %p33, %p34
      %p36 = scmp.ne.s32.totalorder %s25, %s28
      %p37 = scmp.eq.s32.totalorder %s20, 3
      %p38 = por %p36, %p37
      %p39 = scmp.ne.s32.totalorder %s28, %s29
      %p40 = scmp.eq.s32.totalorder %s20, 0
      %p41 = por %p39, %p40
      %p42 = scmp.ne.s32.totalorder %s28, %s29
      %p43 = scmp.eq.s32.totalorder %s21, 3
      %p44 = por %p42, %p43
      %p46 = scmp.ne.s32.totalorder %s29, %s45
      %p47 = scmp.eq.s32.totalorder %s21, 0
      %p48 = por %p46, %p47
      %s50 = sadd.s32 %s49, 1
      %p53 = scmp.eq.s32.totalorder %s15, 3
      %p54 = scmp.ne.s32.totalorder %s49, %s51
      %p55 = scmp.eq.s32.totalorder %s15, 0
      %p56 = por %p54, %p55
      %p57 = scmp.ne.s32.totalorder %s49, %s51
      %p58 = scmp.eq.s32.totalorder %s20, 3
      %p59 = por %p57, %p58
      %p60 = scmp.ne.s32.totalorder %s51, %s52
      %p61 = scmp.eq.s32.totalorder %s20, 0
      %p62 = por %p60, %p61
      %p63 = scmp.ne.s32.totalorder %s51, %s52
      %p64 = scmp.eq.s32.totalorder %s21, 3
      %p65 = por %p63, %p64
      %p67 = scmp.ne.s32.totalorder %s52, %s66
      %p68 = scmp.eq.s32.totalorder %s21, 0
      %p69 = por %p67, %p68
      %s70 = ssub.s32 %s15, %s22
      %p71 = scmp.eq.s32.totalorder %s70, 0
      %s73 = sadd.s32 %s72, 1
      %s74 = scalar_select %p71, %s72, %s73
      %p77 = pneg %p71
      %p78 = scmp.eq.s32.totalorder %s15, 3
      %p79 = por %p77, %p78
      %p80 = scmp.ne.s32.totalorder %s72, %s75
      %p81 = scmp.eq.s32.totalorder %s15, 0
      %p82 = por %p80, %p81
      %p83 = scmp.ne.s32.totalorder %s72, %s75
      %p84 = scmp.eq.s32.totalorder %s20, 3
      %p85 = por %p83, %p84
      %p86 = scmp.ne.s32.totalorder %s75, %s76
      %p87 = scmp.eq.s32.totalorder %s20, 0
      %p88 = por %p86, %p87
      %p89 = scmp.ne.s32.totalorder %s75, %s76
      %p90 = scmp.eq.s32.totalorder %s21, 3
      %p91 = por %p89, %p90
      %p93 = scmp.ne.s32.totalorder %s76, %s92
      %p94 = scmp.eq.s32.totalorder %s21, 0
      %p95 = por %p93, %p94
      %p96 = scmp.le.s32.totalorder 1, %s15
      %p97 = scmp.lt.s32.totalorder %s15, 5
      %p98 = pnand %p96, %p97
      %p99 = pneg %p98
      // Predicated region
      $region9: #{tpu_custom_call.1} parent=5 // pred_check
        _
      $region10: #{tpu_custom_call.1} parent=5 // pred_check_branch
        %101 = sbr.rel (%p98) target = $region12
      $region11: #{tpu_custom_call.1} parent=5 // pred_region
        %s102 = ssub.s32 %s15, 1
        // Predicated region
        $region13: #{tpu_custom_call.1} parent=11 // pred_check
          %p103 = pneg %p62
        $region14: #{tpu_custom_call.1} parent=11 // pred_check_branch
          %105 = sbr.rel (%p103) target = $region16
        $region15: #{tpu_custom_call.1} parent=11 // pred_region
          %s107 = ssub.s32 4096, 4096
          %108 = vsyncadd [#allocation6], %s107
          %s109 = sshll.u32 [#allocation5], 4
          %s110 = int_to_ptr.vmem [resolvable:$true] %s109
          %115 = dma.hbm_to_vmem [thread:$0]  %s1, 4096, %s110, [#allocation6], 128, 128, 8
        $region16: #{tpu_custom_call.1} parent=11 // pred_fallthru
          _
      $region12: #{tpu_custom_call.1} parent=5 // pred_fallthru
        _
      %p116 = scmp.lt.s32.totalorder %s15, 4
      // Predicated region
      $region17: #{tpu_custom_call.1} parent=5 // pred_check
        %p117 = pneg %p116
      $region18: #{tpu_custom_call.1} parent=5 // pred_check_branch
        %119 = sbr.rel (%p117) target = $region20
      $region19: #{tpu_custom_call.1} parent=5 // pred_region
        // Predicated region
        $region21: #{tpu_custom_call.1} parent=19 // pred_check
          %p120 = pneg %p35
        $region22: #{tpu_custom_call.1} parent=19 // pred_check_branch
          %122 = sbr.rel (%p120) target = $region24
        $region23: #{tpu_custom_call.1} parent=19 // pred_region
          %s123 = sand.u32 %s25, 1
          %s124 = scalar_lea.sflag [#allocation3], %s123
          %s125 = sand.u32 %s25, 1
          %s126 = smul.addr %s125, 16
          %s127 = scalar_lea.vmem [#allocation2], %s126
          %s129 = ssub.s32 256, 256
          %130 = vsyncadd %s124, %s129
          %s131 = smul.addr %s15, 2
          %s132 = smul.addr %s131, 128
          %s133 = scalar_lea.hbm %s0, %s132
          %s135 = sshll.u32 %s127, 4
          %s136 = int_to_ptr.vmem [resolvable:$true] %s135
          %138 = dma.hbm_to_vmem [thread:$0]  %s133, 256, %s136, %s124
        $region24: #{tpu_custom_call.1} parent=19 // pred_fallthru
          _
      $region20: #{tpu_custom_call.1} parent=5 // pred_fallthru
        _
      %p139 = scmp.le.s32.totalorder 1, %s15
      %p140 = scmp.lt.s32.totalorder %s15, 5
      %p141 = pnand %p139, %p140
      %p142 = pneg %p141
      // Predicated region
      $region25: #{tpu_custom_call.1} parent=5 // pred_check
        _
      $region26: #{tpu_custom_call.1} parent=5 // pred_check_branch
        %144 = sbr.rel (%p141) target = $region28
      $region27: #{tpu_custom_call.1} parent=5 // pred_region
        %s145 = ssub.s32 %s15, 1
        %s146 = sand.u32 %s28, 1
        %s147 = scalar_lea.sflag [#allocation3], %s146
        %s148 = sand.u32 %s28, 1
        %s149 = smul.addr %s148, 16
        %s150 = scalar_lea.vmem [#allocation2], %s149
        // Predicated region
        $region29: #{tpu_custom_call.1} parent=27 // pred_check
          %p151 = pneg %p41
        $region30: #{tpu_custom_call.1} parent=27 // pred_check_branch
          %153 = sbr.rel (%p151) target = $region32
        $region31: #{tpu_custom_call.1} parent=27 // pred_region
          %154 = dma.done %s147, 256
        $region32: #{tpu_custom_call.1} parent=27 // pred_fallthru
          _
        // Predicated region
        $region33: #{tpu_custom_call.1} parent=27 // pred_check
          %p155 = pneg %p62
        $region34: #{tpu_custom_call.1} parent=27 // pred_check_branch
          %157 = sbr.rel (%p155) target = $region36
        $region35: #{tpu_custom_call.1} parent=27 // pred_region
          %158 = dma.done [#allocation6], 4096
        $region36: #{tpu_custom_call.1} parent=27 // pred_fallthru
          _
        %s159 = sand.u32 %s28, 1
        %s160 = scalar_lea.sflag [#allocation3], %s159
        %s161 = sand.u32 %s28, 1
        %s162 = smul.addr %s161, 16
        %s163 = scalar_lea.vmem [#allocation2], %s162
        %p164 = pneg %p41
        %p165 = pneg %p38
        %p166 = pneg %p62
        %p167 = pneg %p59
        %p168 = pneg %p88
        %p169 = pneg %p85
        %s170 = sand.u32 %s75, 1
        %s171 = scalar_lea.sflag [#allocation4], %s170
        %s172 = sand.u32 %s75, 1
        %s173 = smul.addr %s172, 8
        %s174 = scalar_lea.vmem [#allocation7], %s173
        %v175 = vld [vmem:[%s150] sm:$0xff]
        %v176 = vld [vmem:[%s150 + $0x8] sm:$0xff]
        %v177 = vld [vmem:[#allocation5] sm:$0xff]
        %v178 = vld [vmem:[#allocation5 + $0x8] sm:$0xff]
        %v179 = vld [vmem:[#allocation5 + $0x10] sm:$0xff]
        %v180 = vld [vmem:[#allocation5 + $0x18] sm:$0xff]
        %v181 = vld [vmem:[#allocation5 + $0x20] sm:$0xff]
        %v182 = vld [vmem:[#allocation5 + $0x28] sm:$0xff]
        %v183 = vld [vmem:[#allocation5 + $0x30] sm:$0xff]
        %v184 = vld [vmem:[#allocation5 + $0x38] sm:$0xff]
        %v185 = vld [vmem:[#allocation5 + $0x40] sm:$0xff]
        %v186 = vld [vmem:[#allocation5 + $0x48] sm:$0xff]
        %v187 = vld [vmem:[#allocation5 + $0x50] sm:$0xff]
        %v188 = vld [vmem:[#allocation5 + $0x58] sm:$0xff]
        %v189 = vld [vmem:[#allocation5 + $0x60] sm:$0xff]
        %v190 = vld [vmem:[#allocation5 + $0x68] sm:$0xff]
        %v191 = vld [vmem:[#allocation5 + $0x70] sm:$0xff]
        %v192 = vld [vmem:[#allocation5 + $0x78] sm:$0xff]
        %v193 = vld [vmem:[#allocation5 + $0x80] sm:$0xff]
        %v194 = vld [vmem:[#allocation5 + $0x88] sm:$0xff]
        %v195 = vld [vmem:[#allocation5 + $0x90] sm:$0xff]
        %v196 = vld [vmem:[#allocation5 + $0x98] sm:$0xff]
        %v197 = vld [vmem:[#allocation5 + $0xa0] sm:$0xff]
        %v198 = vld [vmem:[#allocation5 + $0xa8] sm:$0xff]
        %v199 = vld [vmem:[#allocation5 + $0xb0] sm:$0xff]
        %v200 = vld [vmem:[#allocation5 + $0xb8] sm:$0xff]
        %v201 = vld [vmem:[#allocation5 + $0xc0] sm:$0xff]
        %v202 = vld [vmem:[#allocation5 + $0xc8] sm:$0xff]
        %v203 = vld [vmem:[#allocation5 + $0xd0] sm:$0xff]
        %v204 = vld [vmem:[#allocation5 + $0xd8] sm:$0xff]
        %v205 = vld [vmem:[#allocation5 + $0xe0] sm:$0xff]
        %v206 = vld [vmem:[#allocation5 + $0xe8] sm:$0xff]
        %v207 = vld [vmem:[#allocation5 + $0xf0] sm:$0xff]
        %v208 = vld [vmem:[#allocation5 + $0xf8] sm:$0xff]
        %209 = vmatprep.subr.mxu0 0.0
        %210 = vmatpush1.msra.mxu0 %v177
        %211 = vmatprep.subr.mxu0 0.0
        %212 = vmatpush1.msra.mxu0 %v178
        %213 = vmatprep.subr.mxu0 0.0
        %214 = vmatpush1.msra.mxu0 %v179
        %215 = vmatprep.subr.mxu0 0.0
        %216 = vmatpush1.msra.mxu0 %v180
        %217 = vmatprep.subr.mxu0 0.0
        %218 = vmatpush1.msra.mxu0 %v181
        %219 = vmatprep.subr.mxu0 0.0
        %220 = vmatpush1.msra.mxu0 %v182
        %221 = vmatprep.subr.mxu0 0.0
        %222 = vmatpush1.msra.mxu0 %v183
        %223 = vmatprep.subr.mxu0 0.0
        %224 = vmatpush1.msra.mxu0 %v184
        %225 = vmatprep.subr.mxu0 0.0
        %226 = vmatpush1.msra.mxu0 %v185
        %227 = vmatprep.subr.mxu0 0.0
        %228 = vmatpush1.msra.mxu0 %v186
        %229 = vmatprep.subr.mxu0 0.0
        %230 = vmatpush1.msra.mxu0 %v187
        %231 = vmatprep.subr.mxu0 0.0
        %232 = vmatpush1.msra.mxu0 %v188
        %233 = vmatprep.subr.mxu0 0.0
        %234 = vmatpush1.msra.mxu0 %v189
        %235 = vmatprep.subr.mxu0 0.0
        %236 = vmatpush1.msra.mxu0 %v190
        %237 = vmatprep.subr.mxu0 0.0
        %238 = vmatpush1.msra.mxu0 %v191
        %239 = vmatprep.subr.mxu0 0.0
        %240 = vmatpush1.msra.mxu0 %v192
        %241 = vmatprep.subr.mxu0 0.0
        %242 = vmatpush1.msra.mxu0 %v193
        %243 = vmatprep.subr.mxu0 0.0
        %244 = vmatpush1.msra.mxu0 %v194
        %245 = vmatprep.subr.mxu0 0.0
        %246 = vmatpush1.msra.mxu0 %v195
        %247 = vmatprep.subr.mxu0 0.0
        %248 = vmatpush1.msra.mxu0 %v196
        %249 = vmatprep.subr.mxu0 0.0
        %250 = vmatpush1.msra.mxu0 %v197
        %251 = vmatprep.subr.mxu0 0.0
        %252 = vmatpush1.msra.mxu0 %v198
        %253 = vmatprep.subr.mxu0 0.0
        %254 = vmatpush1.msra.mxu0 %v199
        %255 = vmatprep.subr.mxu0 0.0
        %256 = vmatpush1.msra.mxu0 %v200
        %257 = vmatprep.subr.mxu0 0.0
        %258 = vmatpush1.msra.mxu0 %v201
        %259 = vmatprep.subr.mxu0 0.0
        %260 = vmatpush1.msra.mxu0 %v202
        %261 = vmatprep.subr.mxu0 0.0
        %262 = vmatpush1.msra.mxu0 %v203
        %263 = vmatprep.subr.mxu0 0.0
        %264 = vmatpush1.msra.mxu0 %v204
        %265 = vmatprep.subr.mxu0 0.0
        %266 = vmatpush1.msra.mxu0 %v205
        %267 = vmatprep.subr.mxu0 0.0
        %268 = vmatpush1.msra.mxu0 %v206
        %269 = vmatprep.subr.mxu0 0.0
        %270 = vmatpush1.msra.mxu0 %v207
        %271 = vmatprep.subr.mxu0 0.0
        %272 = vmatpush1.msra.mxu0 %v208
        %273 = vmatprep.mubr.f32.mxu0 %v176
        %274 = vmatmul.mubr.f32.gmra.mrb[0].mxu0 %v175
        %v275 = vpop.f32.mrb[0].mxu0
        %v276 = vadd.f32 0.0, %v275
        %v277 = vpop.f32.mrb[0].mxu0
        %278 = vdwg.mxu0
        %279 = vst [vmem:[%s174] sm:$0xff] %v276
        %s280 = sand.u32 %s75, 1
        %s281 = scalar_lea.sflag [#allocation4], %s280
        %s282 = sand.u32 %s75, 1
        %s283 = smul.addr %s282, 8
        %s284 = scalar_lea.vmem [#allocation7], %s283
        // Predicated region
        $region37: #{tpu_custom_call.1} parent=27 // pred_check
          %p285 = pneg %p85
        $region38: #{tpu_custom_call.1} parent=27 // pred_check_branch
          %287 = sbr.rel (%p285) target = $region40
        $region39: #{tpu_custom_call.1} parent=27 // pred_region
          %s289 = ssub.s32 128, 128
          %290 = vsyncadd %s281, %s289
          %s291 = smul.addr %s20, 128
          %s292 = scalar_lea.hbm %s2, %s291
          %s294 = sshll.u32 %s284, 4
          %s295 = int_to_ptr.vmem [resolvable:$true] %s294
          %297 = dma.vmem_to_hbm [thread:$0]  %s295, 128, %s292, %s281
        $region40: #{tpu_custom_call.1} parent=27 // pred_fallthru
          _
      $region28: #{tpu_custom_call.1} parent=5 // pred_fallthru
        _
      %p298 = scmp.le.s32.totalorder 2, %s15
      // Predicated region
      $region41: #{tpu_custom_call.1} parent=5 // pred_check
        %p299 = pneg %p298
      $region42: #{tpu_custom_call.1} parent=5 // pred_check_branch
        %301 = sbr.rel (%p299) target = $region44
      $region43: #{tpu_custom_call.1} parent=5 // pred_region
        %s302 = ssub.s32 %s15, 2
        // Predicated region
        $region45: #{tpu_custom_call.1} parent=43 // pred_check
          %p303 = pneg %p91
        $region46: #{tpu_custom_call.1} parent=43 // pred_check_branch
          %305 = sbr.rel (%p303) target = $region48
        $region47: #{tpu_custom_call.1} parent=43 // pred_region
          %s306 = sand.u32 %s76, 1
          %s307 = scalar_lea.sflag [#allocation4], %s306
          %s308 = sand.u32 %s76, 1
          %s309 = smul.addr %s308, 8
          %s310 = scalar_lea.vmem [#allocation7], %s309
          %311 = dma.done %s307, 128
        $region48: #{tpu_custom_call.1} parent=43 // pred_fallthru
          _
      $region44: #{tpu_custom_call.1} parent=5 // pred_fallthru
        _
    $region6: #{tpu_custom_call.1} parent=1 // loop_footer
      %s19 = sadd.s32 1, %s15
    $region7: #{tpu_custom_call.1} parent=1 // loop_footer_branch
      %14 = sbr.rel target = $region3
    $region8: #{tpu_custom_call.1} parent=1 // loop_exit
      _
    %312 = vsyncpa [#allocation3], 1
    %s313 = scalar_lea.sflag [#allocation3], 1
    %314 = vsyncpa %s313, 1
    %315 = vsyncpa [#allocation6], 1
    %316 = vsyncpa [#allocation4], 1
    %s317 = scalar_lea.sflag [#allocation4], 1
    %318 = vsyncpa %s317, 1

</llo_original>
